<compile_context>
chip_gen: v7x
topology: tpu7x:2x2x1
jax: 0.10.0
libtpu: 0.0.40
codegen_flags: <defaults>
</compile_context>

<pallas_src>
import functools
import math

import jax
import jax.numpy as jnp
from jax.experimental import pallas as pl
from jax.experimental.pallas import tpu as pltpu

_LANE = 128      # lane width; feature dims padded to multiples of this
_SUBLANE = 16    # bf16 sublane packing (also satisfies the f32 requirement of 8)


def _round_up(x, m):
    return (x + m - 1) // m * m


def _pad_to(a, axis, size):
    pad = size - a.shape[axis]
    if pad == 0:
        return a
    widths = [(0, 0)] * a.ndim
    widths[axis] = (0, pad)
    return jnp.pad(a, widths)


def _gelu(x, approximate):
    if approximate:
        # tanh form lowers to the EUP (separate VLIW slot) -> ~free under MXU-bound
        # kernels, at ~1e-3 deviation from PyTorch's exact-erf GELU.
        c = jnp.asarray(math.sqrt(2.0 / math.pi), x.dtype)
        return 0.5 * x * (1.0 + jnp.tanh(c * (x + 0.044715 * x * x * x)))
    # PyTorch nn.GELU default = exact erf formulation (keeps module semantics).
    return 0.5 * x * (1.0 + jax.lax.erf(x * jnp.asarray(1.0 / math.sqrt(2.0), x.dtype)))


def _chip_defaults():
    """Per-generation tile defaults + physical VMEM capacity (bytes)."""
    kind = ""
    try:
        kind = jax.devices()[0].device_kind.lower()
    except Exception:
        pass
    vmem_cap = None
    try:
        vmem_cap = int(pltpu.get_tpu_info().vmem_capacity_bytes)
    except Exception:
        pass
    if "v7" in kind:
        tm_d, th_d, row_splits = 256, 256, 2          # 64 MiB VMEM, 2 TCs/chip
        vmem_cap = vmem_cap or (64 << 20)
    elif "v6" in kind:
        tm_d, th_d, row_splits = 512, 512, 1          # hardest compute/BW ratio
        vmem_cap = vmem_cap or (128 << 20)
    elif "v5" in kind:
        tm_d, th_d, row_splits = 256, 512, 1
        vmem_cap = vmem_cap or (128 << 20)
    else:  # unknown chip: conservative (v7x-safe) defaults
        tm_d, th_d, row_splits = 256, 256, 1
        vmem_cap = vmem_cap or (64 << 20)
    return tm_d, th_d, row_splits, vmem_cap


def mlp_kernel(x_ref, w1_ref, b1_ref, w2_ref, b2_ref, o_ref, *scratch,
               residual, approximate_gelu):
    # When the output dtype is f32, the resident output block IS the accumulator
    # (scratch is empty); otherwise a dedicated f32 VMEM scratch is used.
    acc_ref = scratch[0] if scratch else o_ref
    k = pl.program_id(1)

    @pl.when(k == 0)
    def _init():
        acc_ref[...] = jnp.zeros_like(acc_ref)

    x = x_ref[...]                                              # (tm, Dp_in) compute dtype
    # fc1 on hidden slice k -> bias -> GELU (f32 epilogue), then accumulate the
    # fc2 partial product for this hidden slice.
    h = jnp.dot(x, w1_ref[...], preferred_element_type=jnp.float32)   # (tm, th) f32
    h = _gelu(h + b1_ref[...].astype(jnp.float32), approximate_gelu)
    acc_ref[...] += jnp.dot(h.astype(w2_ref.dtype), w2_ref[...],
                            preferred_element_type=jnp.float32)        # (tm, Dp_out)

    @pl.when(k == pl.num_programs(1) - 1)
    def _finalize():
        y = acc_ref[...] + b2_ref[...].astype(jnp.float32)
        if residual:                                            # static flag
            y = y + x.astype(jnp.float32)
        # eval-mode dropout = identity
        o_ref[...] = y.astype(o_ref.dtype)


def mlp_forward(x, w1, b1, w2, b2, *, block_rows=None, block_hidden=None,
                compute_dtype=jnp.bfloat16, approximate_gelu=False, residual=None):
    """x: (N, D_in); w1: (D_in, H); b1: (H,); w2: (H, D_out); b2: (D_out,).

    residual=None reproduces the module exactly (residual iff D_in == D_out);
    pass True/False to force it explicitly.
    """
    n, d_in = x.shape
    d_hidden = w1.shape[1]
    d_out = w2.shape[1]
    if residual is None:
        residual = (d_in == d_out)        # matches `if input_dim == output_dim`
    out_dtype = x.dtype

    tm_default, th_default, row_splits, vmem_cap = _chip_defaults()
    if block_rows is not None:
        tm_default = block_rows

    # --- pad feature dims to lane-dense multiples of 128 (zero padding is exact) ---
    dp_in = _round_up(d_in, _LANE)
    dp_h = _round_up(d_hidden, _LANE)
    dp_out = _round_up(d_out, _LANE)

    xp = _pad_to(x, 1, dp_in)
    w1p = _pad_to(_pad_to(w1, 0, dp_in), 1, dp_h)
    w2p = _pad_to(_pad_to(w2, 0, dp_h), 1, dp_out)
    b1p = _pad_to(b1.reshape(1, d_hidden), 1, dp_h)    # biases stay f32 (tiny)
    b2p = _pad_to(b2.reshape(1, d_out), 1, dp_out)

    if compute_dtype is not None:
        # bf16 weights AND activation: full MXU rate, half the HBM/VMEM traffic.
        # (Residual then uses the bf16-rounded x; ~2^-8 relative rounding.)
        xp = xp.astype(compute_dtype)
        w1p = w1p.astype(compute_dtype)
        w2p = w2p.astype(compute_dtype)

    # --- row (M) tile: as large as possible so weight streaming is amortized ---
    if n >= tm_default:
        tm = tm_default
    elif row_splits > 1 and n > _SUBLANE:
        # v7x: give each TensorCore a row tile even for small N.
        tm = _round_up(pl.cdiv(n, row_splits), _SUBLANE)
    else:
        tm = _round_up(n, _SUBLANE)
    np_ = _round_up(n, tm)
    xp = _pad_to(xp, 0, np_)

    # --- hidden tile (fc2 reduction axis): streams w1 columns / w2 rows ---
    if block_hidden is None:
        th = dp_h
        for cand in (512, 256, 128):
            if cand <= th_default and cand <= dp_h and dp_h % cand == 0:
                th = cand
                break
    else:
        th = block_hidden
    assert dp_h % th == 0 and (th % _LANE == 0 or th == dp_h)

    grid = (np_ // tm, dp_h // th)
    n_row_tiles = grid[0]

    # Output-resident accumulation: drop the f32 scratch when out dtype is f32.
    use_out_acc = (jnp.dtype(out_dtype) == jnp.float32)
    scratch_shapes = () if use_out_acc else (pltpu.VMEM((tm, dp_out), jnp.float32),)

    # Advisory cost estimate for the XLA scheduler (weights re-streamed per row tile).
    flops = 2 * np_ * (dp_in * dp_h + dp_h * dp_out)
    bytes_accessed = (xp.size * xp.dtype.itemsize
                      + n_row_tiles * (w1p.size * w1p.dtype.itemsize
                                       + w2p.size * w2p.dtype.itemsize
                                       + b1p.size * b1p.dtype.itemsize
                                       + b2p.size * b2p.dtype.itemsize)
                      + np_ * dp_out * jnp.dtype(out_dtype).itemsize)
    cost = pl.CostEstimate(flops=flops, transcendentals=np_ * dp_h,
                           bytes_accessed=bytes_accessed)

    # Rough double-buffered VMEM footprint; ALWAYS set the scoped limit (v5e's
    # default is only 16 MiB) and never exceed ~85% of physical VMEM (v7x: 64 MiB).
    def nbytes(shape, dt):
        return math.prod(shape) * jnp.dtype(dt).itemsize
    vmem_est = (2 * (nbytes((tm, dp_in), xp.dtype)
                     + nbytes((dp_in, th), w1p.dtype)
                     + nbytes((1, th), b1p.dtype)
                     + nbytes((th, dp_out), w2p.dtype)
                     + nbytes((1, dp_out), b2p.dtype)
                     + nbytes((tm, dp_out), out_dtype))
                + (0 if use_out_acc else nbytes((tm, dp_out), jnp.float32)))
    vmem_limit = min(max(int(vmem_est * 5 // 4), 32 * 1024 * 1024),
                     int(vmem_cap * 0.85))

    kernel = functools.partial(mlp_kernel, residual=residual,
                               approximate_gelu=approximate_gelu)

    out = pl.pallas_call(
        kernel,
        out_shape=jax.ShapeDtypeStruct((np_, dp_out), out_dtype),
        grid_spec=pltpu.PrefetchScalarGridSpec(
            num_scalar_prefetch=0,
            grid=grid,
            in_specs=[
                pl.BlockSpec((tm, dp_in), lambda i, k: (i, 0)),    # x row tile (resident over k)
                pl.BlockSpec((dp_in, th), lambda i, k: (0, k)),    # w1 column slice
                pl.BlockSpec((1, th), lambda i, k: (0, k)),        # b1 slice
                pl.BlockSpec((th, dp_out), lambda i, k: (k, 0)),   # w2 row slice
                pl.BlockSpec((1, dp_out), lambda i, k: (0, 0)),    # b2 (constant)
            ],
            out_specs=pl.BlockSpec((tm, dp_out), lambda i, k: (i, 0)),
            scratch_shapes=scratch_shapes,
        ),
        compiler_params=pltpu.CompilerParams(
            dimension_semantics=("parallel", "arbitrary"),
            vmem_limit_bytes=vmem_limit),
        cost_estimate=cost,
    )(xp, w1p, b1p, w2p, b2p)

    return out[:n, :d_out]


def init_mlp_params(key, input_dim, hidden_dim, output_dim, dtype=jnp.float32):
    """Deterministic init mimicking nn.Linear defaults (uniform ±1/sqrt(fan_in)).
    Weights are returned already transposed to (in, out) layout."""
    k1, k2, k3, k4 = jax.random.split(key, 4)
    bound1 = 1.0 / math.sqrt(input_dim)
    bound2 = 1.0 / math.sqrt(hidden_dim)
    w1 = jax.random.uniform(k1, (input_dim, hidden_dim), dtype, -bound1, bound1)
    b1 = jax.random.uniform(k2, (hidden_dim,), dtype, -bound1, bound1)
    w2 = jax.random.uniform(k3, (hidden_dim, output_dim), dtype, -bound2, bound2)
    b2 = jax.random.uniform(k4, (output_dim,), dtype, -bound2, bound2)
    return w1, b1, w2, b2


if __name__ == "__main__":
    # Small shapes: batch=2, seq=8, input_dim=32, hidden_dim=64, output_dim=32
    # (input_dim == output_dim => residual path active, matching the module).
    batch, seq = 2, 8
    input_dim, hidden_dim, output_dim = 32, 64, 32

    key = jax.random.PRNGKey(0)
    kx, kp = jax.random.split(key)
    x = jax.random.normal(kx, (batch, seq, input_dim), dtype=jnp.float32)
    w1, b1, w2, b2 = init_mlp_params(kp, input_dim, hidden_dim, output_dim)

    # Flatten leading dims for the kernel (Linear acts on the last dim).
    x2d = x.reshape(batch * seq, input_dim)
    out2d = mlp_forward(x2d, w1, b1, w2, b2)
    out = jax.block_until_ready(out2d.reshape(batch, seq, output_dim))

    # Reference mirroring the kernel's numerics (bf16 activation/weights, f32
    # accumulation, exact-erf GELU, f32 bias, residual on the bf16-rounded x,
    # eval-mode dropout = identity).
    xb = x2d.astype(jnp.bfloat16)
    h_ref = jnp.dot(xb, w1.astype(jnp.bfloat16),
                    preferred_element_type=jnp.float32) + b1
    h_ref = 0.5 * h_ref * (1.0 + jax.lax.erf(h_ref / jnp.sqrt(2.0)))
    y_ref = jnp.dot(h_ref.astype(jnp.bfloat16), w2.astype(jnp.bfloat16),
                    preferred_element_type=jnp.float32) + b2
    ref = (y_ref + xb.astype(jnp.float32)).reshape(batch, seq, output_dim)

    assert jnp.allclose(out, ref, atol=2e-3, rtol=2e-3), "mismatch vs reference"
    print("KERNEL_OK")
</pallas_src>

<mosaic_0001>
module attributes {stable_mosaic.version = 11 : i64} {
  func.func @mlp_kernel(%arg0: i32, %arg1: i32, %arg2: memref<16x128xbf16, #tpu.memory_space<vmem>>, %arg3: memref<128x128xbf16, #tpu.memory_space<vmem>>, %arg4: memref<1x128xf32, #tpu.memory_space<vmem>>, %arg5: memref<128x128xbf16, #tpu.memory_space<vmem>>, %arg6: memref<1x128xf32, #tpu.memory_space<vmem>>, %arg7: memref<16x128xf32, #tpu.memory_space<vmem>>) attributes {dimension_semantics = [#tpu.dimension_semantics<parallel>, #tpu.dimension_semantics<arbitrary>], iteration_bounds = array<i64: 1, 1>, scalar_prefetch = 0 : i64, scratch_operands = 0 : i64, tpu.core_type = #tpu.core_type<tc>, window_params = [{transform_indices = @transform_0, window_bounds = array<i64: 16, 128>}, {transform_indices = @transform_1, window_bounds = array<i64: 128, 128>}, {transform_indices = @transform_2, window_bounds = array<i64: 1, 128>}, {transform_indices = @transform_3, window_bounds = array<i64: 128, 128>}, {pipeline_mode = #tpu.pipeline_mode<synchronous>, transform_indices = @transform_4, window_bounds = array<i64: 1, 128>}, {transform_indices = @transform_5, window_bounds = array<i64: 16, 128>}]} {
    %c0_i32 = arith.constant 0 : i32
    %0 = arith.cmpi eq, %arg1, %c0_i32 : i32
    %1 = arith.extui %0 : i1 to i32
    %c0_i32_0 = arith.constant 0 : i32
    %2 = arith.cmpi ne, %1, %c0_i32_0 : i32
    scf.if %2 {
      %cst_18 = arith.constant 0.000000e+00 : f32
      %26 = vector.broadcast %cst_18 : f32 to vector<16x128xf32>
      %c0_19 = arith.constant 0 : index
      %c0_20 = arith.constant 0 : index
      %27 = vector.load %arg7[%c0_19, %c0_20] : memref<16x128xf32, #tpu.memory_space<vmem>>, vector<16x128xf32>
      tpu.vector_store %arg7[%c0_19, %c0_20], %26 {strides = array<i32>} : memref<16x128xf32, #tpu.memory_space<vmem>>, vector<16x128xf32>,
    } else {
    }
    %c0 = arith.constant 0 : index
    %c0_1 = arith.constant 0 : index
    %3 = vector.load %arg2[%c0, %c0_1] : memref<16x128xbf16, #tpu.memory_space<vmem>>, vector<16x128xbf16>
    %c0_2 = arith.constant 0 : index
    %c0_3 = arith.constant 0 : index
    %4 = vector.load %arg3[%c0_2, %c0_3] : memref<128x128xbf16, #tpu.memory_space<vmem>>, vector<128x128xbf16>
    %cst = arith.constant dense<0.000000e+00> : vector<16x128xf32>
    %5 = tpu.matmul %3, %4, %cst {dimension_numbers = #tpu.dot_dimension_numbers<[1], [0], [0], [1], [0, 0, 1, 1], [], []>} : vector<16x128xbf16>, vector<128x128xbf16>, vector<16x128xf32> -> vector<16x128xf32>
    %c0_4 = arith.constant 0 : index
    %c0_5 = arith.constant 0 : index
    %6 = vector.load %arg4[%c0_4, %c0_5] : memref<1x128xf32, #tpu.memory_space<vmem>>, vector<1x128xf32>
    %7 = vector.broadcast %6 : vector<1x128xf32> to vector<16x128xf32>
    %8 = arith.addf %5, %7 : vector<16x128xf32>
    %cst_6 = arith.constant 5.000000e-01 : f32
    %9 = vector.broadcast %cst_6 : f32 to vector<16x128xf32>
    %10 = arith.mulf %9, %8 : vector<16x128xf32>
    %cst_7 = arith.constant 0.707106769 : f32
    %11 = vector.broadcast %cst_7 : f32 to vector<16x128xf32>
    %12 = arith.mulf %8, %11 : vector<16x128xf32>
    %13 = math.erf %12 : vector<16x128xf32>
    %cst_8 = arith.constant 1.000000e+00 : f32
    %14 = vector.broadcast %cst_8 : f32 to vector<16x128xf32>
    %15 = arith.addf %14, %13 : vector<16x128xf32>
    %16 = arith.mulf %10, %15 : vector<16x128xf32>
    %c0_9 = arith.constant 0 : index
    %c0_10 = arith.constant 0 : index
    %17 = vector.load %arg7[%c0_9, %c0_10] : memref<16x128xf32, #tpu.memory_space<vmem>>, vector<16x128xf32>
    %18 = arith.truncf %16 : vector<16x128xf32> to vector<16x128xbf16>
    %c0_11 = arith.constant 0 : index
    %c0_12 = arith.constant 0 : index
    %19 = vector.load %arg5[%c0_11, %c0_12] : memref<128x128xbf16, #tpu.memory_space<vmem>>, vector<128x128xbf16>
    %cst_13 = arith.constant dense<0.000000e+00> : vector<16x128xf32>
    %20 = tpu.matmul %18, %19, %cst_13 {dimension_numbers = #tpu.dot_dimension_numbers<[1], [0], [0], [1], [0, 0, 1, 1], [], []>} : vector<16x128xbf16>, vector<128x128xbf16>, vector<16x128xf32> -> vector<16x128xf32>
    %21 = arith.addf %17, %20 : vector<16x128xf32>
    %c0_14 = arith.constant 0 : index
    %c0_15 = arith.constant 0 : index
    %22 = vector.load %arg7[%c0_14, %c0_15] : memref<16x128xf32, #tpu.memory_space<vmem>>, vector<16x128xf32>
    tpu.vector_store %arg7[%c0_14, %c0_15], %21 {strides = array<i32>} : memref<16x128xf32, #tpu.memory_space<vmem>>, vector<16x128xf32>,
    %c0_i32_16 = arith.constant 0 : i32
    %23 = arith.cmpi eq, %arg1, %c0_i32_16 : i32
    %24 = arith.extui %23 : i1 to i32
    %c0_i32_17 = arith.constant 0 : i32
    %25 = arith.cmpi ne, %24, %c0_i32_17 : i32
    scf.if %25 {
      %c0_18 = arith.constant 0 : index
      %c0_19 = arith.constant 0 : index
      %26 = vector.load %arg7[%c0_18, %c0_19] : memref<16x128xf32, #tpu.memory_space<vmem>>, vector<16x128xf32>
      %c0_20 = arith.constant 0 : index
      %c0_21 = arith.constant 0 : index
      %27 = vector.load %arg6[%c0_20, %c0_21] : memref<1x128xf32, #tpu.memory_space<vmem>>, vector<1x128xf32>
      %28 = vector.broadcast %27 : vector<1x128xf32> to vector<16x128xf32>
      %29 = arith.addf %26, %28 : vector<16x128xf32>
      %30 = arith.extf %3 : vector<16x128xbf16> to vector<16x128xf32>
      %31 = arith.addf %29, %30 : vector<16x128xf32>
      %c0_22 = arith.constant 0 : index
      %c0_23 = arith.constant 0 : index
      %32 = vector.load %arg7[%c0_22, %c0_23] : memref<16x128xf32, #tpu.memory_space<vmem>>, vector<16x128xf32>
      tpu.vector_store %arg7[%c0_22, %c0_23], %31 {strides = array<i32>} : memref<16x128xf32, #tpu.memory_space<vmem>>, vector<16x128xf32>,
    } else {
    }
    return
  }
  func.func @transform_0(%arg0: i32, %arg1: i32) -> (i32, i32) {
    %c0_i32 = arith.constant 0 : i32
    %c0_i32_0 = arith.constant 0 : i32
    return %arg0, %c0_i32 : i32, i32
  }
  func.func @transform_1(%arg0: i32, %arg1: i32) -> (i32, i32) {
    %c0_i32 = arith.constant 0 : i32
    %c0_i32_0 = arith.constant 0 : i32
    return %c0_i32, %arg1 : i32, i32
  }
  func.func @transform_2(%arg0: i32, %arg1: i32) -> (i32, i32) {
    %c0_i32 = arith.constant 0 : i32
    %c0_i32_0 = arith.constant 0 : i32
    return %c0_i32, %arg1 : i32, i32
  }
  func.func @transform_3(%arg0: i32, %arg1: i32) -> (i32, i32) {
    %c0_i32 = arith.constant 0 : i32
    %c0_i32_0 = arith.constant 0 : i32
    return %arg1, %c0_i32 : i32, i32
  }
  func.func @transform_4(%arg0: i32, %arg1: i32) -> (i32, i32) {
    %c0_i32 = arith.constant 0 : i32
    %c0_i32_0 = arith.constant 0 : i32
    %c0_i32_1 = arith.constant 0 : i32
    return %c0_i32, %c0_i32_0 : i32, i32
  }
  func.func @transform_5(%arg0: i32, %arg1: i32) -> (i32, i32) {
    %c0_i32 = arith.constant 0 : i32
    %c0_i32_0 = arith.constant 0 : i32
    return %arg0, %c0_i32 : i32, i32
  }
}

</mosaic_0001>

<llo_original>
// kernel: tpu_custom_call.1
$region0: #{tpu_custom_call.1}
  #allocation0 [shape = 'u32[]', space=smem, size = 0x4, offset = 0x4, fixed_abs, tag = 'smem constant byte address 0x4 - core index']
  #allocation1 [shape = 'u32[144,128]{1,0:T(1,128)}', space=vmem, size = 0x12000, scoped, tag = 'internal scratch']
  %s0 = inlined_call_operand.hbm [shape: bf16[16,128], index: 0, kind: input, shape index: {}]
  %s1 = inlined_call_operand.hbm [shape: bf16[128,128], index: 1, kind: input, shape index: {}]
  %s2 = inlined_call_operand.vmem [shape: f32[1,128], index: 2, kind: input, shape index: {}]
  %s3 = inlined_call_operand.hbm [shape: bf16[128,128], index: 3, kind: input, shape index: {}]
  %s4 = inlined_call_operand.vmem [shape: f32[1,128], index: 4, kind: input, shape index: {}]
  %s5 = inlined_call_operand.hbm [shape: f32[16,128], index: 5, kind: output, shape index: {}]
  %s6 = sld [smem:[#allocation0]]
  $region50: #{tpu_custom_call.1} parent=0
    _
  %s8 = ssub.s32 1, %s6
  %s9 = scalar_select 0, %s8, %s6
  $region1: #{tpu_custom_call.1} parent=0
    #allocation2 [shape = 'u8[4096]{0}', space=vmem, size = 0x1000, scoped, tag = 'input window, operand 0, single buffered']
    #allocation3 [shape = 's32[1]{0}', space=sflag, size = 0x4, scoped, tag = 'scoped memory for tpu_custom_call.1']
    #allocation4 [shape = 's32[1]{0}', space=sflag, size = 0x4, scoped, tag = 'scoped memory for tpu_custom_call.1']
    #allocation5 [shape = 'u8[32768]{0}', space=vmem, size = 0x8000, scoped, tag = 'input window, operand 1, single buffered']
    #allocation6 [shape = 's32[1]{0}', space=sflag, size = 0x4, scoped, tag = 'scoped memory for tpu_custom_call.1']
    #allocation7 [shape = 'u8[32768]{0}', space=vmem, size = 0x8000, scoped, tag = 'input window, operand 3, single buffered']
    #allocation8 [shape = 'u8[8192]{0}', space=vmem, size = 0x2000, scoped, tag = 'output window, operand 0, single buffered']
    %10 = vsyncpa [#allocation3], 0
    %11 = vsyncpa [#allocation6], 0
    %12 = vsyncpa [#allocation4], 0
    // Predicated region
    $region2: #{tpu_custom_call.1} parent=1 // pred_check
      _
    $region3: #{tpu_custom_call.1} parent=1 // pred_check_branch
      %14 = sbr.rel (0) target = $region5
    $region4: #{tpu_custom_call.1} parent=1 // pred_region
      %s16 = ssub.s32 128, 128
      %17 = vsyncadd [#allocation3], %s16
      %s18 = sshll.u32 [#allocation2], 4
      %s19 = int_to_ptr.vmem [resolvable:$true] %s18
      %24 = dma.hbm_to_vmem [thread:$0]  %s0, 128, %s19, [#allocation3], 64, 64, 4
    $region5: #{tpu_custom_call.1} parent=1 // pred_fallthru
      _
    // Predicated region
    $region6: #{tpu_custom_call.1} parent=1 // pred_check
      _
    $region7: #{tpu_custom_call.1} parent=1 // pred_check_branch
      %26 = sbr.rel (0) target = $region9
    $region8: #{tpu_custom_call.1} parent=1 // pred_region
      %s28 = ssub.s32 1024, 1024
      %29 = vsyncadd [#allocation6], %s28
      %s30 = sshll.u32 [#allocation5], 4
      %s31 = int_to_ptr.vmem [resolvable:$true] %s30
      %36 = dma.hbm_to_vmem [thread:$0]  %s1, 1024, %s31, [#allocation6], 64, 64, 4
    $region9: #{tpu_custom_call.1} parent=1 // pred_fallthru
      _
    // Predicated region
    $region10: #{tpu_custom_call.1} parent=1 // pred_check
      _
    $region11: #{tpu_custom_call.1} parent=1 // pred_check_branch
      %38 = sbr.rel (0) target = $region13
    $region12: #{tpu_custom_call.1} parent=1 // pred_region
      _
    $region13: #{tpu_custom_call.1} parent=1 // pred_fallthru
      _
    // Predicated region
    $region14: #{tpu_custom_call.1} parent=1 // pred_check
      _
    $region15: #{tpu_custom_call.1} parent=1 // pred_check_branch
      %40 = sbr.rel (0) target = $region17
    $region16: #{tpu_custom_call.1} parent=1 // pred_region
      %s42 = ssub.s32 1024, 1024
      %43 = vsyncadd [#allocation6], %s42
      %s44 = sshll.u32 [#allocation7], 4
      %s45 = int_to_ptr.vmem [resolvable:$true] %s44
      %50 = dma.hbm_to_vmem [thread:$0]  %s3, 1024, %s45, [#allocation6], 64, 64, 4
    $region17: #{tpu_custom_call.1} parent=1 // pred_fallthru
      _
    // Predicated region
    $region18: #{tpu_custom_call.1} parent=1 // pred_check
      _
    $region19: #{tpu_custom_call.1} parent=1 // pred_check_branch
      %52 = sbr.rel (0) target = $region21
    $region20: #{tpu_custom_call.1} parent=1 // pred_region
      _
    $region21: #{tpu_custom_call.1} parent=1 // pred_fallthru
      _
    // Predicated region
    $region22: #{tpu_custom_call.1} parent=1 // pred_check
      _
    $region23: #{tpu_custom_call.1} parent=1 // pred_check_branch
      %54 = sbr.rel (0) target = $region25
    $region24: #{tpu_custom_call.1} parent=1 // pred_region
      %55 = dma.done [#allocation3], 128
    $region25: #{tpu_custom_call.1} parent=1 // pred_fallthru
      _
    // Predicated region
    $region26: #{tpu_custom_call.1} parent=1 // pred_check
      _
    $region27: #{tpu_custom_call.1} parent=1 // pred_check_branch
      %57 = sbr.rel (0) target = $region29
    $region28: #{tpu_custom_call.1} parent=1 // pred_region
      %58 = dma.done [#allocation6], 1024
    $region29: #{tpu_custom_call.1} parent=1 // pred_fallthru
      _
    // Predicated region
    $region30: #{tpu_custom_call.1} parent=1 // pred_check
      _
    $region31: #{tpu_custom_call.1} parent=1 // pred_check_branch
      %60 = sbr.rel (0) target = $region33
    $region32: #{tpu_custom_call.1} parent=1 // pred_region
      %61 = dma.done [#allocation6], 1024
    $region33: #{tpu_custom_call.1} parent=1 // pred_fallthru
      _
    %p63 = scmp.eq.s32.totalorder 0, 0
    // Predicated region
    $region34: #{tpu_custom_call.1} parent=1 // pred_check
      %p64 = pneg %p63
    $region35: #{tpu_custom_call.1} parent=1 // pred_check_branch
      %66 = sbr.rel (%p64) target = $region37
    $region36: #{tpu_custom_call.1} parent=1 // pred_region
      %67 = vst [vmem:[#allocation8] sm:$0xff] 0.0
      %68 = vst [vmem:[#allocation8 + $0x8] sm:$0xff] 0.0
    $region37: #{tpu_custom_call.1} parent=1 // pred_fallthru
      _
    %v69 = vld [vmem:[#allocation2] sm:$0xf]
    %v70 = vld [vmem:[#allocation2 + $0x4] sm:$0xf]
    %v71 = vld [vmem:[#allocation5] sm:$0xf]
    %v72 = vld [vmem:[#allocation5 + $0x4] sm:$0xf]
    %v73 = vld [vmem:[#allocation5 + $0x8] sm:$0xf]
    %v74 = vld [vmem:[#allocation5 + $0xc] sm:$0xf]
    %v75 = vld [vmem:[#allocation5 + $0x10] sm:$0xf]
    %v76 = vld [vmem:[#allocation5 + $0x14] sm:$0xf]
    %v77 = vld [vmem:[#allocation5 + $0x18] sm:$0xf]
    %v78 = vld [vmem:[#allocation5 + $0x1c] sm:$0xf]
    %v79 = vld [vmem:[#allocation5 + $0x20] sm:$0xf]
    %v80 = vld [vmem:[#allocation5 + $0x24] sm:$0xf]
    %v81 = vld [vmem:[#allocation5 + $0x28] sm:$0xf]
    %v82 = vld [vmem:[#allocation5 + $0x2c] sm:$0xf]
    %v83 = vld [vmem:[#allocation5 + $0x30] sm:$0xf]
    %v84 = vld [vmem:[#allocation5 + $0x34] sm:$0xf]
    %v85 = vld [vmem:[#allocation5 + $0x38] sm:$0xf]
    %v86 = vld [vmem:[#allocation5 + $0x3c] sm:$0xf]
    %v87 = vld [vmem:[%s2] sm:$0x1]
    %v89 = vlaneseq
    %v90 = vshrl.u32 %v89, 7
    %v91 = vsub.s32 0, %v90
    %v92 = vrot.slane %v87, %v91
    %v96 = vunpack.c.l.b16 %v69
    %v97 = vunpack.c.l.b16 %v70
    %v98 = vpack.c.b16 %v97, %v96
    %v116 = vunpack.c.l.b16 %v71
    %v117 = vunpack.c.l.b16 %v72
    %v118 = vunpack.c.l.b16 %v73
    %v119 = vunpack.c.l.b16 %v74
    %v120 = vunpack.c.l.b16 %v75
    %v121 = vunpack.c.l.b16 %v76
    %v122 = vunpack.c.l.b16 %v77
    %v123 = vunpack.c.l.b16 %v78
    %v124 = vunpack.c.l.b16 %v79
    %v125 = vunpack.c.l.b16 %v80
    %v126 = vunpack.c.l.b16 %v81
    %v127 = vunpack.c.l.b16 %v82
    %v128 = vunpack.c.l.b16 %v83
    %v129 = vunpack.c.l.b16 %v84
    %v130 = vunpack.c.l.b16 %v85
    %v131 = vunpack.c.l.b16 %v86
    %v132 = vpack.c.b16 %v117, %v116
    %v133 = vpack.c.b16 %v119, %v118
    %v134 = vpack.c.b16 %v121, %v120
    %v135 = vpack.c.b16 %v123, %v122
    %v136 = vpack.c.b16 %v125, %v124
    %v137 = vpack.c.b16 %v127, %v126
    %v138 = vpack.c.b16 %v129, %v128
    %v139 = vpack.c.b16 %v131, %v130
    %148 = vmatprep.subr.bf16.mxu0 0
    %149 = vmatpush1.bf16.msra.mxu0 %v132
    %150 = vmatprep.subr.bf16.mxu0 0
    %151 = vmatpush1.bf16.msra.mxu0 %v133
    %152 = vmatprep.subr.bf16.mxu0 0
    %153 = vmatpush1.bf16.msra.mxu0 %v134
    %154 = vmatprep.subr.bf16.mxu0 0
    %155 = vmatpush1.bf16.msra.mxu0 %v135
    %156 = vmatprep.subr.bf16.mxu0 0
    %157 = vmatpush1.bf16.msra.mxu0 %v136
    %158 = vmatprep.subr.bf16.mxu0 0
    %159 = vmatpush1.bf16.msra.mxu0 %v137
    %160 = vmatprep.subr.bf16.mxu0 0
    %161 = vmatpush1.bf16.msra.mxu0 %v138
    %162 = vmatprep.subr.bf16.mxu0 0
    %163 = vmatpush1.bf16.msra.mxu0 %v139
    %164 = vmatprep.subr.bf16.mxu0 0
    %165 = vmatpush1.bf16.msra.mxu0 0
    %166 = vmatprep.subr.bf16.mxu0 0
    %167 = vmatpush1.bf16.msra.mxu0 0
    %168 = vmatprep.subr.bf16.mxu0 0
    %169 = vmatpush1.bf16.msra.mxu0 0
    %170 = vmatprep.subr.bf16.mxu0 0
    %171 = vmatpush1.bf16.msra.mxu0 0
    %172 = vmatprep.subr.bf16.mxu0 0
    %173 = vmatpush1.bf16.msra.mxu0 0
    %174 = vmatprep.subr.bf16.mxu0 0
    %175 = vmatpush1.bf16.msra.mxu0 0
    %176 = vmatprep.subr.bf16.mxu0 0
    %177 = vmatpush1.bf16.msra.mxu0 0
    %178 = vmatprep.subr.bf16.mxu0 0
    %179 = vmatpush1.bf16.msra.mxu0 0
    %180 = vmatprep.mubr.bf16.mxu0 0
    %181 = vmatmul.mubr.bf16.gmra.mrb[0].mxu0 %v98
    %v182 = vpop.f32.mrb[0].mxu0
    %v183 = vadd.f32 %v92, %v182
    %v184 = vpop.f32.mrb[0].mxu0
    %v185 = vpop.f32.mrb[0].mxu0
    %v186 = vadd.f32 %v92, %v185
    %v187 = vpop.f32.mrb[0].mxu0
    %188 = vdwg.mxu0
    %v189 = vmul.f32 %v183, 0.5
    %v190 = vmul.f32 %v186, 0.5
    %v191 = vmul.f32 %v183, 0.70710677
    %v192 = vmul.f32 %v186, 0.70710677
    %v193 = verf.f32.pop %v191
    %v194 = verf.f32.pop %v192
    %v195 = vadd.f32 %v193, 1.0
    %v196 = vadd.f32 %v194, 1.0
    %v197 = vmul.f32 %v189, %v195
    %v198 = vmul.f32 %v190, %v196
    %v199 = vld [vmem:[#allocation8] sm:$0xff]
    %v200 = vld [vmem:[#allocation8 + $0x8] sm:$0xff]
    %v201 = vpack.c.bf16 %v198, %v197
    %v202 = vld [vmem:[#allocation7] sm:$0xf]
    %v203 = vld [vmem:[#allocation7 + $0x4] sm:$0xf]
    %v204 = vld [vmem:[#allocation7 + $0x8] sm:$0xf]
    %v205 = vld [vmem:[#allocation7 + $0xc] sm:$0xf]
    %v206 = vld [vmem:[#allocation7 + $0x10] sm:$0xf]
    %v207 = vld [vmem:[#allocation7 + $0x14] sm:$0xf]
    %v208 = vld [vmem:[#allocation7 + $0x18] sm:$0xf]
    %v209 = vld [vmem:[#allocation7 + $0x1c] sm:$0xf]
    %v210 = vld [vmem:[#allocation7 + $0x20] sm:$0xf]
    %v211 = vld [vmem:[#allocation7 + $0x24] sm:$0xf]
    %v212 = vld [vmem:[#allocation7 + $0x28] sm:$0xf]
    %v213 = vld [vmem:[#allocation7 + $0x2c] sm:$0xf]
    %v214 = vld [vmem:[#allocation7 + $0x30] sm:$0xf]
    %v215 = vld [vmem:[#allocation7 + $0x34] sm:$0xf]
    %v216 = vld [vmem:[#allocation7 + $0x38] sm:$0xf]
    %v217 = vld [vmem:[#allocation7 + $0x3c] sm:$0xf]
    %v234 = vunpack.c.l.b16 %v202
    %v235 = vunpack.c.l.b16 %v203
    %v236 = vunpack.c.l.b16 %v204
    %v237 = vunpack.c.l.b16 %v205
    %v238 = vunpack.c.l.b16 %v206
    %v239 = vunpack.c.l.b16 %v207
    %v240 = vunpack.c.l.b16 %v208
    %v241 = vunpack.c.l.b16 %v209
    %v242 = vunpack.c.l.b16 %v210
    %v243 = vunpack.c.l.b16 %v211
    %v244 = vunpack.c.l.b16 %v212
    %v245 = vunpack.c.l.b16 %v213
    %v246 = vunpack.c.l.b16 %v214
    %v247 = vunpack.c.l.b16 %v215
    %v248 = vunpack.c.l.b16 %v216
    %v249 = vunpack.c.l.b16 %v217
    %v250 = vpack.c.b16 %v235, %v234
    %v251 = vpack.c.b16 %v237, %v236
    %v252 = vpack.c.b16 %v239, %v238
    %v253 = vpack.c.b16 %v241, %v240
    %v254 = vpack.c.b16 %v243, %v242
    %v255 = vpack.c.b16 %v245, %v244
    %v256 = vpack.c.b16 %v247, %v246
    %v257 = vpack.c.b16 %v249, %v248
    %266 = vmatprep.subr.bf16.mxu0 0
    %267 = vmatpush1.bf16.msra.mxu0 %v250
    %268 = vmatprep.subr.bf16.mxu0 0
    %269 = vmatpush1.bf16.msra.mxu0 %v251
    %270 = vmatprep.subr.bf16.mxu0 0
    %271 = vmatpush1.bf16.msra.mxu0 %v252
    %272 = vmatprep.subr.bf16.mxu0 0
    %273 = vmatpush1.bf16.msra.mxu0 %v253
    %274 = vmatprep.subr.bf16.mxu0 0
    %275 = vmatpush1.bf16.msra.mxu0 %v254
    %276 = vmatprep.subr.bf16.mxu0 0
    %277 = vmatpush1.bf16.msra.mxu0 %v255
    %278 = vmatprep.subr.bf16.mxu0 0
    %279 = vmatpush1.bf16.msra.mxu0 %v256
    %280 = vmatprep.subr.bf16.mxu0 0
    %281 = vmatpush1.bf16.msra.mxu0 %v257
    %282 = vmatprep.subr.bf16.mxu0 0
    %283 = vmatpush1.bf16.msra.mxu0 0
    %284 = vmatprep.subr.bf16.mxu0 0
    %285 = vmatpush1.bf16.msra.mxu0 0
    %286 = vmatprep.subr.bf16.mxu0 0
    %287 = vmatpush1.bf16.msra.mxu0 0
    %288 = vmatprep.subr.bf16.mxu0 0
    %289 = vmatpush1.bf16.msra.mxu0 0
    %290 = vmatprep.subr.bf16.mxu0 0
    %291 = vmatpush1.bf16.msra.mxu0 0
    %292 = vmatprep.subr.bf16.mxu0 0
    %293 = vmatpush1.bf16.msra.mxu0 0
    %294 = vmatprep.subr.bf16.mxu0 0
    %295 = vmatpush1.bf16.msra.mxu0 0
    %296 = vmatprep.subr.bf16.mxu0 0
    %297 = vmatpush1.bf16.msra.mxu0 0
    %298 = vmatprep.mubr.bf16.mxu0 0
    %299 = vmatmul.mubr.bf16.gmra.mrb[0].mxu0 %v201
    %v300 = vpop.f32.mrb[0].mxu0
    %v301 = vadd.f32 0.0, %v300
    %v302 = vpop.f32.mrb[0].mxu0
    %v303 = vpop.f32.mrb[0].mxu0
    %v304 = vadd.f32 0.0, %v303
    %v305 = vpop.f32.mrb[0].mxu0
    %306 = vdwg.mxu0
    %v307 = vadd.f32 %v199, %v301
    %v308 = vadd.f32 %v200, %v304
    %309 = vst [vmem:[#allocation8] sm:$0xff] %v307
    %310 = vst [vmem:[#allocation8 + $0x8] sm:$0xff] %v308
    // Predicated region
    $region38: #{tpu_custom_call.1} parent=1 // pred_check
      %p311 = pneg %p63
    $region39: #{tpu_custom_call.1} parent=1 // pred_check_branch
      %313 = sbr.rel (%p311) target = $region41
    $region40: #{tpu_custom_call.1} parent=1 // pred_region
      %v314 = vld [vmem:[#allocation8] sm:$0xff]
      %v315 = vld [vmem:[#allocation8 + $0x8] sm:$0xff]
      %v316 = vld [vmem:[%s4] sm:$0x1]
      %v318 = vlaneseq
      %v319 = vshrl.u32 %v318, 7
      %v320 = vsub.s32 0, %v319
      %v321 = vrot.slane %v316, %v320
      %v323 = vadd.f32 %v314, %v321
      %v324 = vadd.f32 %v315, %v321
      %v325 = vunpack.c.l.bf16 %v69
      %v326 = vunpack.c.l.bf16 %v70
      %v327 = vadd.f32 %v323, %v325
      %v328 = vadd.f32 %v324, %v326
      %329 = vst [vmem:[#allocation8] sm:$0xff] %v327
      %330 = vst [vmem:[#allocation8 + $0x8] sm:$0xff] %v328
    $region41: #{tpu_custom_call.1} parent=1 // pred_fallthru
      _
    // Predicated region
    $region42: #{tpu_custom_call.1} parent=1 // pred_check
      _
    $region43: #{tpu_custom_call.1} parent=1 // pred_check_branch
      %332 = sbr.rel (0) target = $region45
    $region44: #{tpu_custom_call.1} parent=1 // pred_region
      %s334 = ssub.s32 256, 256
      %335 = vsyncadd [#allocation4], %s334
      %s336 = sshll.u32 [#allocation8], 4
      %s337 = int_to_ptr.vmem [resolvable:$true] %s336
      %342 = dma.vmem_to_hbm [thread:$0]  %s337, 256, %s5, [#allocation4], 128, 128, 8
    $region45: #{tpu_custom_call.1} parent=1 // pred_fallthru
      _
    // Predicated region
    $region46: #{tpu_custom_call.1} parent=1 // pred_check
      _
    $region47: #{tpu_custom_call.1} parent=1 // pred_check_branch
      %344 = sbr.rel (0) target = $region49
    $region48: #{tpu_custom_call.1} parent=1 // pred_region
      %345 = dma.done [#allocation4], 256
    $region49: #{tpu_custom_call.1} parent=1 // pred_fallthru
      _
    %346 = vsyncpa [#allocation3], 1
    %347 = vsyncpa [#allocation6], 1
    %348 = vsyncpa [#allocation4], 1

</llo_original>
